<compile_context>
chip_gen: v5e
topology: v5e:2x2
jax: 0.10.0
libtpu: 0.0.40
codegen_flags: <defaults>
</compile_context>

<pallas_src>
import functools

import jax
import jax.numpy as jnp
from jax.experimental import pallas as pl
from jax.experimental.pallas import tpu as pltpu


# ------------------------------------------------------------------ helpers ----
def _layernorm(v, w, b, eps=1e-5):
    # PyTorch LayerNorm with .float() compute, then cast back to v.dtype.
    vf = v.astype(jnp.float32)
    mu = jnp.mean(vf, axis=-1, keepdims=True)
    var = jnp.mean(jnp.square(vf - mu), axis=-1, keepdims=True)
    y = (vf - mu) * jax.lax.rsqrt(var + eps)
    return (y * w.astype(jnp.float32) + b.astype(jnp.float32)).astype(v.dtype)


def _maybe_single_buffered(shape, index_map):
    # Constant-index weights: double-buffering buys nothing -> Buffered(1).
    if hasattr(pl, "Buffered"):
        try:
            return pl.BlockSpec(shape, index_map, pipeline_mode=pl.Buffered(1))
        except TypeError:
            pass
    return pl.BlockSpec(shape, index_map)


def _const_spec_2(p):   # full-array block, constant index, 2-D grid, single-buffered
    return _maybe_single_buffered(p.shape, lambda b, r, _n=p.ndim: (0,) * _n)


def _const_spec_3(p):   # full-array block, constant index, 3-D grid, single-buffered
    return _maybe_single_buffered(p.shape, lambda b, i, j, _n=p.ndim: (0,) * _n)


def _tpu_generation_defaults():
    """Returns (default seq-block, vmem_limit_bytes) for the local TPU generation."""
    try:
        kind = jax.devices()[0].device_kind.lower()
    except Exception:
        kind = ""
    if "v7" in kind:                       # 64 MiB physical VMEM per TC
        return 256, 48 * 1024 * 1024
    if "v6" in kind:                       # 128 MiB VMEM, 256x256 MXU
        return 256, 100 * 1024 * 1024
    if "v5" in kind or "v4" in kind:       # 128-wide MXU
        return 128, 100 * 1024 * 1024
    return 128, None                       # unknown: leave compiler default


# ---------------- kernel 1: LN1 + fused QKV projection (head-major out) --------
def _ln_qkv_kernel(x_ref, ln1w_ref, ln1b_ref, wqkv_ref, bqkv_ref,
                   q_ref, k_ref, v_ref, *, n_head, dh):
    x = x_ref[0]                                          # (tr, D)
    ln1 = _layernorm(x, ln1w_ref[0], ln1b_ref[0])
    # One (tr, D) x (D, 3D) MXU pass; scale and biases pre-folded (k bias = 0).
    qkv = jnp.dot(ln1, wqkv_ref[...], preferred_element_type=jnp.float32)
    qkv = (qkv + bqkv_ref[0].astype(jnp.float32)).astype(q_ref.dtype)
    D = n_head * dh
    # Write head-major directly (no XLA transpose between kernels).
    for h in range(n_head):
        q_ref[0, h] = qkv[:, h * dh:(h + 1) * dh]
        k_ref[0, h] = qkv[:, D + h * dh: D + (h + 1) * dh]
        v_ref[0, h] = qkv[:, 2 * D + h * dh: 2 * D + (h + 1) * dh]


# ------ kernel 2: flash attention + K=D output projection + residual 1 ---------
def _flash_attn_kernel(x_ref, q_ref, k_ref, v_ref, wo_ref, bo_ref,
                       o_ref, m_sc, l_sc, acc_sc):
    ki = pl.program_id(2)

    @pl.when(ki == 0)
    def _init():
        m_sc[...] = jnp.full_like(m_sc, -jnp.inf)
        l_sc[...] = jnp.zeros_like(l_sc)
        acc_sc[...] = jnp.zeros_like(acc_sc)

    q = q_ref[0]                                          # (H, tq, dh)
    k = k_ref[0]                                          # (H, tk, dh)
    v = v_ref[0]                                          # (H, tk, dh)

    # scores for this k-block (scale already folded into the q/k projections)
    s = jnp.einsum('hqd,hkd->hqk', q, k, preferred_element_type=jnp.float32)
    m_prev = m_sc[...]                                    # (H, tq, 1)
    m_new = jnp.maximum(m_prev, jnp.max(s, axis=-1, keepdims=True))
    alpha = jnp.exp(m_prev - m_new)
    p = jnp.exp(s - m_new)                                # (H, tq, tk) f32
    l_sc[...] = alpha * l_sc[...] + jnp.sum(p, axis=-1, keepdims=True)
    acc_sc[...] = alpha * acc_sc[...] + jnp.einsum(
        'hqk,hkd->hqd', p.astype(v.dtype), v, preferred_element_type=jnp.float32)
    m_sc[...] = m_new

    @pl.when(ki == pl.num_programs(2) - 1)
    def _finalize():
        x = x_ref[0]                                      # (tq, D) residual input
        dtype = x.dtype
        n_head = acc_sc.shape[0]
        inv_l = pl.reciprocal(l_sc[...], approx=True)     # EUP slot (≈ free)
        norm = acc_sc[...] * inv_l                        # (H, tq, dh) f32
        # Concatenate heads along lanes -> single K=D contraction on the MXU.
        attn = jnp.concatenate([norm[h] for h in range(n_head)],
                               axis=-1).astype(dtype)     # (tq, D)
        proj = jnp.dot(attn, wo_ref[...], preferred_element_type=jnp.float32)
        proj = proj + bo_ref[0].astype(jnp.float32)
        o_ref[0] = (x + proj.astype(dtype)).astype(o_ref.dtype)   # residual 1


# -------- kernel 3: LN2 + MLP, K-tiled over the 4D hidden dim + residual 2 -----
def _mlp_kernel(x1_ref, ln2w_ref, ln2b_ref, w1_ref, b1_ref, w2_ref, b2_ref,
                o_ref, ln2_sc, acc_sc):
    j = pl.program_id(2)

    @pl.when(j == 0)
    def _init():
        ln2_sc[...] = _layernorm(x1_ref[0], ln2w_ref[0], ln2b_ref[0])
        acc_sc[...] = jnp.zeros_like(acc_sc)

    h = jnp.dot(ln2_sc[...], w1_ref[...], preferred_element_type=jnp.float32)
    h = h + b1_ref[0].astype(jnp.float32)
    # exact (erf-based) GELU, matching torch.nn.GELU() default
    h = 0.5 * h * (1.0 + jax.lax.erf(h * (2.0 ** -0.5)))
    acc_sc[...] += jnp.dot(h.astype(x1_ref.dtype), w2_ref[...],
                           preferred_element_type=jnp.float32)

    @pl.when(j == pl.num_programs(2) - 1)
    def _finalize():
        x1 = x1_ref[0]
        mlp = acc_sc[...] + b2_ref[0].astype(jnp.float32)
        o_ref[0] = (x1 + mlp.astype(x1.dtype)).astype(o_ref.dtype)   # residual 2


# ----------------------------------------------------------------- wrapper ----
def residual_attention_block(x, params, n_head, *, block_r=None, block_q=None,
                             block_k=None, block_h=None, vmem_limit_bytes=None):
    B, T, D = x.shape
    assert D % n_head == 0
    dh = D // n_head
    dtype = x.dtype
    n_mlp = params['w1'].shape[0]

    default_blk, default_vmem = _tpu_generation_defaults()
    if vmem_limit_bytes is None:
        vmem_limit_bytes = default_vmem

    def pick_seq(blk):
        blk = min(T, default_blk) if blk is None else blk
        assert T % blk == 0 and (blk == T or blk % 8 == 0), (T, blk)
        return blk

    block_r, block_q, block_k = pick_seq(block_r), pick_seq(block_q), pick_seq(block_k)

    if block_h is None:
        block_h = n_mlp if n_mlp <= 512 else 512
    assert n_mlp % block_h == 0 and (block_h == n_mlp or block_h % 128 == 0), \
        (n_mlp, block_h)

    def cparams(sems):
        return pltpu.CompilerParams(dimension_semantics=sems,
                                    vmem_limit_bytes=vmem_limit_bytes)

    # ---- one-time weight prep (outside the kernels) ----------------------------
    scale = dh ** (-0.25)
    ln1_w, ln1_b = params['ln1_w'], params['ln1_b']
    ln2_w, ln2_b = params['ln2_w'], params['ln2_b']
    # Fused QKV weight (in, 3*out) with scale folded into q/k columns; k bias = 0.
    w_qkv = jnp.concatenate([(params['wq'] * scale).T,
                             (params['wk'] * scale).T,
                             params['wv'].T], axis=1).astype(dtype)        # (D, 3D)
    b_qkv = jnp.concatenate([params['bq'] * scale,
                             jnp.zeros_like(params['bq']),
                             params['bv']], axis=1).astype(dtype)          # (1, 3D)
    wo_t = params['wo'].T.astype(dtype)                                    # (D, D)
    bo = params['bo'].astype(dtype)                                        # (1, D)
    w1_t = params['w1'].T.astype(dtype)                                    # (D, 4D)
    b1 = params['b1'].astype(dtype)                                        # (1, 4D)
    w2_t = params['w2'].T.astype(dtype)                                    # (4D, D)
    b2 = params['b2'].astype(dtype)                                        # (1, D)

    # ------------------ kernel 1: LN1 + fused QKV (head-major out) --------------
    nR = T // block_r
    qkv_weights = [ln1_w, ln1_b, w_qkv, b_qkv]
    q4, k4, v4 = pl.pallas_call(
        functools.partial(_ln_qkv_kernel, n_head=n_head, dh=dh),
        out_shape=tuple(jax.ShapeDtypeStruct((B, n_head, T, dh), dtype)
                        for _ in range(3)),
        grid_spec=pltpu.PrefetchScalarGridSpec(
            num_scalar_prefetch=0,
            grid=(B, nR),
            in_specs=[pl.BlockSpec((1, block_r, D), lambda b, r: (b, r, 0))]
                     + [_const_spec_2(p) for p in qkv_weights],
            out_specs=[pl.BlockSpec((1, n_head, block_r, dh),
                                    lambda b, r: (b, 0, r, 0))] * 3,
        ),
        compiler_params=cparams(("parallel", "parallel")),
    )(x, *qkv_weights)

    # -------- kernel 2: flash attention + out-proj + residual 1 -----------------
    nQ, nK = T // block_q, T // block_k
    x1 = pl.pallas_call(
        _flash_attn_kernel,
        out_shape=jax.ShapeDtypeStruct((B, T, D), dtype),
        grid_spec=pltpu.PrefetchScalarGridSpec(
            num_scalar_prefetch=0,
            grid=(B, nQ, nK),
            in_specs=[
                # residual input: only read at finalize -> single-buffered
                _maybe_single_buffered((1, block_q, D), lambda b, qi, ki: (b, qi, 0)),
                pl.BlockSpec((1, n_head, block_q, dh), lambda b, qi, ki: (b, 0, qi, 0)),
                pl.BlockSpec((1, n_head, block_k, dh), lambda b, qi, ki: (b, 0, ki, 0)),
                pl.BlockSpec((1, n_head, block_k, dh), lambda b, qi, ki: (b, 0, ki, 0)),
                _const_spec_3(wo_t), _const_spec_3(bo),
            ],
            out_specs=pl.BlockSpec((1, block_q, D), lambda b, qi, ki: (b, qi, 0)),
            scratch_shapes=[
                pltpu.VMEM((n_head, block_q, 1), jnp.float32),   # m (running max)
                pltpu.VMEM((n_head, block_q, 1), jnp.float32),   # l (running denom)
                pltpu.VMEM((n_head, block_q, dh), jnp.float32),  # acc
            ],
        ),
        compiler_params=cparams(("parallel", "parallel", "arbitrary")),
    )(x, q4, k4, v4, wo_t, bo)

    # -------- kernel 3: LN2 + MLP (K-tiled over hidden dim) + residual 2 --------
    nH = n_mlp // block_h
    out = pl.pallas_call(
        _mlp_kernel,
        out_shape=jax.ShapeDtypeStruct((B, T, D), dtype),
        grid_spec=pltpu.PrefetchScalarGridSpec(
            num_scalar_prefetch=0,
            grid=(B, nR, nH),
            in_specs=[
                pl.BlockSpec((1, block_r, D), lambda b, r, j: (b, r, 0)),   # x1
                _const_spec_3(ln2_w), _const_spec_3(ln2_b),
                pl.BlockSpec((D, block_h), lambda b, r, j: (0, j)),         # w1 chunk
                pl.BlockSpec((1, block_h), lambda b, r, j: (0, j)),         # b1 chunk
                pl.BlockSpec((block_h, D), lambda b, r, j: (j, 0)),         # w2 chunk
                _const_spec_3(b2),
            ],
            out_specs=pl.BlockSpec((1, block_r, D), lambda b, r, j: (b, r, 0)),
            scratch_shapes=[
                pltpu.VMEM((block_r, D), dtype),        # ln2(x1) cache
                pltpu.VMEM((block_r, D), jnp.float32),  # MLP accumulator
            ],
        ),
        compiler_params=cparams(("parallel", "parallel", "arbitrary")),
    )(x1, ln2_w, ln2_b, w1_t, b1, w2_t, b2)
    return out


# -------------------------------------------------------- pure-JAX reference --
def residual_attention_block_ref(x, p, n_head):
    B, T, D = x.shape
    dh = D // n_head

    def ln(v, w, b):
        vf = v.astype(jnp.float32)
        mu = vf.mean(-1, keepdims=True)
        var = ((vf - mu) ** 2).mean(-1, keepdims=True)
        return (((vf - mu) / jnp.sqrt(var + 1e-5)) * w + b).astype(v.dtype)

    ln1 = ln(x, p['ln1_w'][0], p['ln1_b'][0])
    q = ln1 @ p['wq'].T + p['bq'][0]
    k = ln1 @ p['wk'].T
    v = ln1 @ p['wv'].T + p['bv'][0]
    scale = dh ** (-0.25)
    qh = q.reshape(B, T, n_head, dh).transpose(0, 2, 1, 3) * scale
    kh = k.reshape(B, T, n_head, dh).transpose(0, 2, 3, 1) * scale
    vh = v.reshape(B, T, n_head, dh).transpose(0, 2, 1, 3)
    qk = qh @ kh
    w = jax.nn.softmax(qk.astype(jnp.float32), axis=-1).astype(x.dtype)
    wv = (w @ vh).transpose(0, 2, 1, 3).reshape(B, T, D)
    x = x + (wv @ p['wo'].T + p['bo'][0])

    ln2 = ln(x, p['ln2_w'][0], p['ln2_b'][0])
    h = ln2 @ p['w1'].T + p['b1'][0]
    h = 0.5 * h * (1.0 + jax.lax.erf(h * (2.0 ** -0.5)))
    x = x + (h @ p['w2'].T + p['b2'][0])
    return x


# --------------------------------------------------------------------- main ---
if __name__ == "__main__":
    B, T, D, H = 2, 16, 64, 4        # batch, seq, n_state, n_head  (dh = 16)
    n_mlp = 4 * D
    key = jax.random.PRNGKey(0)
    ks = jax.random.split(key, 16)

    def rnd(k, shape, s=0.05):
        return (s * jax.random.normal(k, shape)).astype(jnp.float32)

    params = {
        # LayerNorms (kept 2-D (1, D) for TPU-friendly layouts)
        'ln1_w': jnp.ones((1, D), jnp.float32) + rnd(ks[0], (1, D)),
        'ln1_b': rnd(ks[1], (1, D)),
        'ln2_w': jnp.ones((1, D), jnp.float32) + rnd(ks[2], (1, D)),
        'ln2_b': rnd(ks[3], (1, D)),
        # attention projections (PyTorch layout: (out, in))
        'wq': rnd(ks[4], (D, D)), 'bq': rnd(ks[5], (1, D)),
        'wk': rnd(ks[6], (D, D)),                       # key has no bias
        'wv': rnd(ks[7], (D, D)), 'bv': rnd(ks[8], (1, D)),
        'wo': rnd(ks[9], (D, D)), 'bo': rnd(ks[10], (1, D)),
        # MLP
        'w1': rnd(ks[11], (n_mlp, D)), 'b1': rnd(ks[12], (1, n_mlp)),
        'w2': rnd(ks[13], (D, n_mlp)), 'b2': rnd(ks[14], (1, D)),
    }

    x = jax.random.normal(ks[15], (B, T, D), jnp.float32)

    # Small blocks so row tiling, the flash k-loop and MLP hidden K-tiling (nH=2)
    # are all actually exercised at this toy size.
    out = residual_attention_block(x, params, H,
                                   block_r=8, block_q=8, block_k=8, block_h=128)
    out = jax.block_until_ready(out)

    ref = residual_attention_block_ref(x, params, H)
    assert out.shape == (B, T, D) and out.dtype == jnp.float32
    err = float(jnp.max(jnp.abs(out - ref)))
    # tolerance loosened slightly for pl.reciprocal(approx=True) in the softmax
    assert jnp.allclose(out, ref, rtol=2e-3, atol=2e-3), f"max abs err {err}"
    print("KERNEL_OK")
</pallas_src>

<mosaic_0001>
module attributes {stable_mosaic.version = 11 : i64} {
  func.func @_ln_qkv_kernel(%arg0: i32, %arg1: i32, %arg2: memref<1x8x64xf32, #tpu.memory_space<vmem>>, %arg3: memref<1x64xf32, #tpu.memory_space<vmem>>, %arg4: memref<1x64xf32, #tpu.memory_space<vmem>>, %arg5: memref<64x192xf32, #tpu.memory_space<vmem>>, %arg6: memref<1x192xf32, #tpu.memory_space<vmem>>, %arg7: memref<1x4x8x16xf32, #tpu.memory_space<vmem>>, %arg8: memref<1x4x8x16xf32, #tpu.memory_space<vmem>>, %arg9: memref<1x4x8x16xf32, #tpu.memory_space<vmem>>) attributes {dimension_semantics = [#tpu.dimension_semantics<parallel>, #tpu.dimension_semantics<parallel>], iteration_bounds = array<i64: 2, 2>, scalar_prefetch = 0 : i64, scratch_operands = 0 : i64, tpu.core_type = #tpu.core_type<tc>, window_params = [{transform_indices = @transform_0, window_bounds = array<i64: 1, 8, 64>}, {pipeline_mode = #tpu.pipeline_mode<synchronous>, transform_indices = @transform_1, window_bounds = array<i64: 1, 64>}, {pipeline_mode = #tpu.pipeline_mode<synchronous>, transform_indices = @transform_2, window_bounds = array<i64: 1, 64>}, {pipeline_mode = #tpu.pipeline_mode<synchronous>, transform_indices = @transform_3, window_bounds = array<i64: 64, 192>}, {pipeline_mode = #tpu.pipeline_mode<synchronous>, transform_indices = @transform_4, window_bounds = array<i64: 1, 192>}, {transform_indices = @transform_5, window_bounds = array<i64: 1, 4, 8, 16>}, {transform_indices = @transform_6, window_bounds = array<i64: 1, 4, 8, 16>}, {transform_indices = @transform_7, window_bounds = array<i64: 1, 4, 8, 16>}]} {
    %c0 = arith.constant 0 : index
    %c0_0 = arith.constant 0 : index
    %c0_1 = arith.constant 0 : index
    %0 = vector.load %arg2[%c0, %c0_0, %c0_1] : memref<1x8x64xf32, #tpu.memory_space<vmem>>, vector<1x8x64xf32>
    %1 = vector.shape_cast %0 : vector<1x8x64xf32> to vector<8x64xf32>
    %c0_2 = arith.constant 0 : index
    %c0_3 = arith.constant 0 : index
    %2 = vector.load %arg3[%c0_2, %c0_3] : memref<1x64xf32, #tpu.memory_space<vmem>>, vector<1x64xf32>
    %3 = vector.shape_cast %2 : vector<1x64xf32> to vector<64xf32>
    %c0_4 = arith.constant 0 : index
    %c0_5 = arith.constant 0 : index
    %4 = vector.load %arg4[%c0_4, %c0_5] : memref<1x64xf32, #tpu.memory_space<vmem>>, vector<1x64xf32>
    %5 = vector.shape_cast %4 : vector<1x64xf32> to vector<64xf32>
    %cst = arith.constant dense<0.000000e+00> : vector<8xf32>
    %6 = vector.multi_reduction <add>, %1, %cst [1] : vector<8x64xf32> to vector<8xf32>
    %7 = vector.shape_cast %6 : vector<8xf32> to vector<8x1xf32>
    %cst_6 = arith.constant 6.400000e+01 : f32
    %8 = vector.broadcast %cst_6 : f32 to vector<8x1xf32>
    %9 = arith.divf %7, %8 : vector<8x1xf32>
    %10 = vector.broadcast %9 : vector<8x1xf32> to vector<8x64xf32>
    %11 = arith.subf %1, %10 : vector<8x64xf32>
    %12 = arith.mulf %11, %11 : vector<8x64xf32>
    %cst_7 = arith.constant dense<0.000000e+00> : vector<8xf32>
    %13 = vector.multi_reduction <add>, %12, %cst_7 [1] : vector<8x64xf32> to vector<8xf32>
    %14 = vector.shape_cast %13 : vector<8xf32> to vector<8x1xf32>
    %cst_8 = arith.constant 6.400000e+01 : f32
    %15 = vector.broadcast %cst_8 : f32 to vector<8x1xf32>
    %16 = arith.divf %14, %15 : vector<8x1xf32>
    %17 = vector.broadcast %9 : vector<8x1xf32> to vector<8x64xf32>
    %18 = arith.subf %1, %17 : vector<8x64xf32>
    %cst_9 = arith.constant 9.99999974E-6 : f32
    %19 = vector.broadcast %cst_9 : f32 to vector<8x1xf32>
    %20 = arith.addf %16, %19 : vector<8x1xf32>
    %21 = math.rsqrt %20 : vector<8x1xf32>
    %22 = vector.broadcast %21 : vector<8x1xf32> to vector<8x64xf32>
    %23 = arith.mulf %18, %22 : vector<8x64xf32>
    %24 = vector.shape_cast %3 : vector<64xf32> to vector<1x64xf32>
    %25 = vector.broadcast %24 : vector<1x64xf32> to vector<8x64xf32>
    %26 = arith.mulf %23, %25 : vector<8x64xf32>
    %27 = vector.shape_cast %5 : vector<64xf32> to vector<1x64xf32>
    %28 = vector.broadcast %27 : vector<1x64xf32> to vector<8x64xf32>
    %29 = arith.addf %26, %28 : vector<8x64xf32>
    %c0_10 = arith.constant 0 : index
    %c0_11 = arith.constant 0 : index
    %30 = vector.load %arg5[%c0_10, %c0_11] : memref<64x192xf32, #tpu.memory_space<vmem>>, vector<64x192xf32>
    %cst_12 = arith.constant dense<0.000000e+00> : vector<8x192xf32>
    %31 = tpu.matmul %29, %30, %cst_12 {dimension_numbers = #tpu.dot_dimension_numbers<[1], [0], [0], [1], [0, 0, 1, 1], [], []>} : vector<8x64xf32>, vector<64x192xf32>, vector<8x192xf32> -> vector<8x192xf32>
    %c0_13 = arith.constant 0 : index
    %c0_14 = arith.constant 0 : index
    %32 = vector.load %arg6[%c0_13, %c0_14] : memref<1x192xf32, #tpu.memory_space<vmem>>, vector<1x192xf32>
    %33 = vector.shape_cast %32 : vector<1x192xf32> to vector<192xf32>
    %34 = vector.shape_cast %33 : vector<192xf32> to vector<1x192xf32>
    %35 = vector.broadcast %34 : vector<1x192xf32> to vector<8x192xf32>
    %36 = arith.addf %31, %35 : vector<8x192xf32>
    %37 = vector.extract_strided_slice %36 {offsets = [0, 0], sizes = [8, 16], strides = [1, 1]} : vector<8x192xf32> to vector<8x16xf32>
    %c0_15 = arith.constant 0 : index
    %c0_16 = arith.constant 0 : index
    %c0_17 = arith.constant 0 : index
    %c0_18 = arith.constant 0 : index
    %38 = vector.load %arg7[%c0_15, %c0_16, %c0_17, %c0_18] : memref<1x4x8x16xf32, #tpu.memory_space<vmem>>, vector<1x1x8x16xf32>
    %39 = vector.shape_cast %38 : vector<1x1x8x16xf32> to vector<8x16xf32>
    %40 = vector.shape_cast %37 : vector<8x16xf32> to vector<1x1x8x16xf32>
    tpu.vector_store %arg7[%c0_15, %c0_16, %c0_17, %c0_18], %40 {strides = array<i32>} : memref<1x4x8x16xf32, #tpu.memory_space<vmem>>, vector<1x1x8x16xf32>,
    %41 = vector.extract_strided_slice %36 {offsets = [0, 64], sizes = [8, 16], strides = [1, 1]} : vector<8x192xf32> to vector<8x16xf32>
    %c0_19 = arith.constant 0 : index
    %c0_20 = arith.constant 0 : index
    %c0_21 = arith.constant 0 : index
    %c0_22 = arith.constant 0 : index
    %42 = vector.load %arg8[%c0_19, %c0_20, %c0_21, %c0_22] : memref<1x4x8x16xf32, #tpu.memory_space<vmem>>, vector<1x1x8x16xf32>
    %43 = vector.shape_cast %42 : vector<1x1x8x16xf32> to vector<8x16xf32>
    %44 = vector.shape_cast %41 : vector<8x16xf32> to vector<1x1x8x16xf32>
    tpu.vector_store %arg8[%c0_19, %c0_20, %c0_21, %c0_22], %44 {strides = array<i32>} : memref<1x4x8x16xf32, #tpu.memory_space<vmem>>, vector<1x1x8x16xf32>,
    %45 = vector.extract_strided_slice %36 {offsets = [0, 128], sizes = [8, 16], strides = [1, 1]} : vector<8x192xf32> to vector<8x16xf32>
    %c0_23 = arith.constant 0 : index
    %c0_24 = arith.constant 0 : index
    %c0_25 = arith.constant 0 : index
    %c0_26 = arith.constant 0 : index
    %46 = vector.load %arg9[%c0_23, %c0_24, %c0_25, %c0_26] : memref<1x4x8x16xf32, #tpu.memory_space<vmem>>, vector<1x1x8x16xf32>
    %47 = vector.shape_cast %46 : vector<1x1x8x16xf32> to vector<8x16xf32>
    %48 = vector.shape_cast %45 : vector<8x16xf32> to vector<1x1x8x16xf32>
    tpu.vector_store %arg9[%c0_23, %c0_24, %c0_25, %c0_26], %48 {strides = array<i32>} : memref<1x4x8x16xf32, #tpu.memory_space<vmem>>, vector<1x1x8x16xf32>,
    %49 = vector.extract_strided_slice %36 {offsets = [0, 16], sizes = [8, 16], strides = [1, 1]} : vector<8x192xf32> to vector<8x16xf32>
    %c0_27 = arith.constant 0 : index
    %c1 = arith.constant 1 : index
    %c0_28 = arith.constant 0 : index
    %c0_29 = arith.constant 0 : index
    %50 = vector.load %arg7[%c0_27, %c1, %c0_28, %c0_29] : memref<1x4x8x16xf32, #tpu.memory_space<vmem>>, vector<1x1x8x16xf32>
    %51 = vector.shape_cast %50 : vector<1x1x8x16xf32> to vector<8x16xf32>
    %52 = vector.shape_cast %49 : vector<8x16xf32> to vector<1x1x8x16xf32>
    tpu.vector_store %arg7[%c0_27, %c1, %c0_28, %c0_29], %52 {strides = array<i32>} : memref<1x4x8x16xf32, #tpu.memory_space<vmem>>, vector<1x1x8x16xf32>,
    %53 = vector.extract_strided_slice %36 {offsets = [0, 80], sizes = [8, 16], strides = [1, 1]} : vector<8x192xf32> to vector<8x16xf32>
    %c0_30 = arith.constant 0 : index
    %c1_31 = arith.constant 1 : index
    %c0_32 = arith.constant 0 : index
    %c0_33 = arith.constant 0 : index
    %54 = vector.load %arg8[%c0_30, %c1_31, %c0_32, %c0_33] : memref<1x4x8x16xf32, #tpu.memory_space<vmem>>, vector<1x1x8x16xf32>
    %55 = vector.shape_cast %54 : vector<1x1x8x16xf32> to vector<8x16xf32>
    %56 = vector.shape_cast %53 : vector<8x16xf32> to vector<1x1x8x16xf32>
    tpu.vector_store %arg8[%c0_30, %c1_31, %c0_32, %c0_33], %56 {strides = array<i32>} : memref<1x4x8x16xf32, #tpu.memory_space<vmem>>, vector<1x1x8x16xf32>,
    %57 = vector.extract_strided_slice %36 {offsets = [0, 144], sizes = [8, 16], strides = [1, 1]} : vector<8x192xf32> to vector<8x16xf32>
    %c0_34 = arith.constant 0 : index
    %c1_35 = arith.constant 1 : index
    %c0_36 = arith.constant 0 : index
    %c0_37 = arith.constant 0 : index
    %58 = vector.load %arg9[%c0_34, %c1_35, %c0_36, %c0_37] : memref<1x4x8x16xf32, #tpu.memory_space<vmem>>, vector<1x1x8x16xf32>
    %59 = vector.shape_cast %58 : vector<1x1x8x16xf32> to vector<8x16xf32>
    %60 = vector.shape_cast %57 : vector<8x16xf32> to vector<1x1x8x16xf32>
    tpu.vector_store %arg9[%c0_34, %c1_35, %c0_36, %c0_37], %60 {strides = array<i32>} : memref<1x4x8x16xf32, #tpu.memory_space<vmem>>, vector<1x1x8x16xf32>,
    %61 = vector.extract_strided_slice %36 {offsets = [0, 32], sizes = [8, 16], strides = [1, 1]} : vector<8x192xf32> to vector<8x16xf32>
    %c0_38 = arith.constant 0 : index
    %c2 = arith.constant 2 : index
    %c0_39 = arith.constant 0 : index
    %c0_40 = arith.constant 0 : index
    %62 = vector.load %arg7[%c0_38, %c2, %c0_39, %c0_40] : memref<1x4x8x16xf32, #tpu.memory_space<vmem>>, vector<1x1x8x16xf32>
    %63 = vector.shape_cast %62 : vector<1x1x8x16xf32> to vector<8x16xf32>
    %64 = vector.shape_cast %61 : vector<8x16xf32> to vector<1x1x8x16xf32>
    tpu.vector_store %arg7[%c0_38, %c2, %c0_39, %c0_40], %64 {strides = array<i32>} : memref<1x4x8x16xf32, #tpu.memory_space<vmem>>, vector<1x1x8x16xf32>,
    %65 = vector.extract_strided_slice %36 {offsets = [0, 96], sizes = [8, 16], strides = [1, 1]} : vector<8x192xf32> to vector<8x16xf32>
    %c0_41 = arith.constant 0 : index
    %c2_42 = arith.constant 2 : index
    %c0_43 = arith.constant 0 : index
    %c0_44 = arith.constant 0 : index
    %66 = vector.load %arg8[%c0_41, %c2_42, %c0_43, %c0_44] : memref<1x4x8x16xf32, #tpu.memory_space<vmem>>, vector<1x1x8x16xf32>
    %67 = vector.shape_cast %66 : vector<1x1x8x16xf32> to vector<8x16xf32>
    %68 = vector.shape_cast %65 : vector<8x16xf32> to vector<1x1x8x16xf32>
    tpu.vector_store %arg8[%c0_41, %c2_42, %c0_43, %c0_44], %68 {strides = array<i32>} : memref<1x4x8x16xf32, #tpu.memory_space<vmem>>, vector<1x1x8x16xf32>,
    %69 = vector.extract_strided_slice %36 {offsets = [0, 160], sizes = [8, 16], strides = [1, 1]} : vector<8x192xf32> to vector<8x16xf32>
    %c0_45 = arith.constant 0 : index
    %c2_46 = arith.constant 2 : index
    %c0_47 = arith.constant 0 : index
    %c0_48 = arith.constant 0 : index
    %70 = vector.load %arg9[%c0_45, %c2_46, %c0_47, %c0_48] : memref<1x4x8x16xf32, #tpu.memory_space<vmem>>, vector<1x1x8x16xf32>
    %71 = vector.shape_cast %70 : vector<1x1x8x16xf32> to vector<8x16xf32>
    %72 = vector.shape_cast %69 : vector<8x16xf32> to vector<1x1x8x16xf32>
    tpu.vector_store %arg9[%c0_45, %c2_46, %c0_47, %c0_48], %72 {strides = array<i32>} : memref<1x4x8x16xf32, #tpu.memory_space<vmem>>, vector<1x1x8x16xf32>,
    %73 = vector.extract_strided_slice %36 {offsets = [0, 48], sizes = [8, 16], strides = [1, 1]} : vector<8x192xf32> to vector<8x16xf32>
    %c0_49 = arith.constant 0 : index
    %c3 = arith.constant 3 : index
    %c0_50 = arith.constant 0 : index
    %c0_51 = arith.constant 0 : index
    %74 = vector.load %arg7[%c0_49, %c3, %c0_50, %c0_51] : memref<1x4x8x16xf32, #tpu.memory_space<vmem>>, vector<1x1x8x16xf32>
    %75 = vector.shape_cast %74 : vector<1x1x8x16xf32> to vector<8x16xf32>
    %76 = vector.shape_cast %73 : vector<8x16xf32> to vector<1x1x8x16xf32>
    tpu.vector_store %arg7[%c0_49, %c3, %c0_50, %c0_51], %76 {strides = array<i32>} : memref<1x4x8x16xf32, #tpu.memory_space<vmem>>, vector<1x1x8x16xf32>,
    %77 = vector.extract_strided_slice %36 {offsets = [0, 112], sizes = [8, 16], strides = [1, 1]} : vector<8x192xf32> to vector<8x16xf32>
    %c0_52 = arith.constant 0 : index
    %c3_53 = arith.constant 3 : index
    %c0_54 = arith.constant 0 : index
    %c0_55 = arith.constant 0 : index
    %78 = vector.load %arg8[%c0_52, %c3_53, %c0_54, %c0_55] : memref<1x4x8x16xf32, #tpu.memory_space<vmem>>, vector<1x1x8x16xf32>
    %79 = vector.shape_cast %78 : vector<1x1x8x16xf32> to vector<8x16xf32>
    %80 = vector.shape_cast %77 : vector<8x16xf32> to vector<1x1x8x16xf32>
    tpu.vector_store %arg8[%c0_52, %c3_53, %c0_54, %c0_55], %80 {strides = array<i32>} : memref<1x4x8x16xf32, #tpu.memory_space<vmem>>, vector<1x1x8x16xf32>,
    %81 = vector.extract_strided_slice %36 {offsets = [0, 176], sizes = [8, 16], strides = [1, 1]} : vector<8x192xf32> to vector<8x16xf32>
    %c0_56 = arith.constant 0 : index
    %c3_57 = arith.constant 3 : index
    %c0_58 = arith.constant 0 : index
    %c0_59 = arith.constant 0 : index
    %82 = vector.load %arg9[%c0_56, %c3_57, %c0_58, %c0_59] : memref<1x4x8x16xf32, #tpu.memory_space<vmem>>, vector<1x1x8x16xf32>
    %83 = vector.shape_cast %82 : vector<1x1x8x16xf32> to vector<8x16xf32>
    %84 = vector.shape_cast %81 : vector<8x16xf32> to vector<1x1x8x16xf32>
    tpu.vector_store %arg9[%c0_56, %c3_57, %c0_58, %c0_59], %84 {strides = array<i32>} : memref<1x4x8x16xf32, #tpu.memory_space<vmem>>, vector<1x1x8x16xf32>,
    return
  }
  func.func @transform_0(%arg0: i32, %arg1: i32) -> (i32, i32, i32) {
    %c0_i32 = arith.constant 0 : i32
    %c0_i32_0 = arith.constant 0 : i32
    return %arg0, %arg1, %c0_i32 : i32, i32, i32
  }
  func.func @transform_1(%arg0: i32, %arg1: i32) -> (i32, i32) {
    %c0_i32 = arith.constant 0 : i32
    %c0_i32_0 = arith.constant 0 : i32
    %c0_i32_1 = arith.constant 0 : i32
    return %c0_i32, %c0_i32_0 : i32, i32
  }
  func.func @transform_2(%arg0: i32, %arg1: i32) -> (i32, i32) {
    %c0_i32 = arith.constant 0 : i32
    %c0_i32_0 = arith.constant 0 : i32
    %c0_i32_1 = arith.constant 0 : i32
    return %c0_i32, %c0_i32_0 : i32, i32
  }
  func.func @transform_3(%arg0: i32, %arg1: i32) -> (i32, i32) {
    %c0_i32 = arith.constant 0 : i32
    %c0_i32_0 = arith.constant 0 : i32
    %c0_i32_1 = arith.constant 0 : i32
    return %c0_i32, %c0_i32_0 : i32, i32
  }
  func.func @transform_4(%arg0: i32, %arg1: i32) -> (i32, i32) {
    %c0_i32 = arith.constant 0 : i32
    %c0_i32_0 = arith.constant 0 : i32
    %c0_i32_1 = arith.constant 0 : i32
    return %c0_i32, %c0_i32_0 : i32, i32
  }
  func.func @transform_5(%arg0: i32, %arg1: i32) -> (i32, i32, i32, i32) {
    %c0_i32 = arith.constant 0 : i32
    %c0_i32_0 = arith.constant 0 : i32
    %c0_i32_1 = arith.constant 0 : i32
    return %arg0, %c0_i32, %arg1, %c0_i32_0 : i32, i32, i32, i32
  }
  func.func @transform_6(%arg0: i32, %arg1: i32) -> (i32, i32, i32, i32) {
    %c0_i32 = arith.constant 0 : i32
    %c0_i32_0 = arith.constant 0 : i32
    %c0_i32_1 = arith.constant 0 : i32
    return %arg0, %c0_i32, %arg1, %c0_i32_0 : i32, i32, i32, i32
  }
  func.func @transform_7(%arg0: i32, %arg1: i32) -> (i32, i32, i32, i32) {
    %c0_i32 = arith.constant 0 : i32
    %c0_i32_0 = arith.constant 0 : i32
    %c0_i32_1 = arith.constant 0 : i32
    return %arg0, %c0_i32, %arg1, %c0_i32_0 : i32, i32, i32, i32
  }
}

</mosaic_0001>

<llo_original>
// kernel: tpu_custom_call.1
$region0: #{tpu_custom_call.1}
  #allocation0 [shape = 'u32[]', space=smem, size = 0x4, offset = 0x4, fixed_abs, tag = 'smem constant byte address 0x4 - core index']
  #allocation1 [shape = 'u32[72,128]{1,0:T(1,128)}', space=vmem, size = 0x9000, scoped, tag = 'internal scratch']
  %s0 = inlined_call_operand.hbm [shape: f32[2,16,64], index: 0, kind: input, shape index: {}]
  %s1 = inlined_call_operand.hbm [shape: f32[1,64], index: 1, kind: input, shape index: {}]
  %s2 = inlined_call_operand.vmem [shape: f32[1,64], index: 2, kind: input, shape index: {}]
  %s3 = inlined_call_operand.hbm [shape: f32[64,192], index: 3, kind: input, shape index: {}]
  %s4 = inlined_call_operand.vmem [shape: f32[1,192], index: 4, kind: input, shape index: {}]
  %s5 = inlined_call_operand.hbm [shape: f32[2,4,16,16], index: 5, kind: output, shape index: {0}]
  %s6 = inlined_call_operand.hbm [shape: f32[2,4,16,16], index: 6, kind: output, shape index: {1}]
  %s7 = inlined_call_operand.hbm [shape: f32[2,4,16,16], index: 7, kind: output, shape index: {2}]
  %8 = xla_tuple %s5, %s6, %s7
  %s9 = sld [smem:[#allocation0]]
  $region81: #{tpu_custom_call.1} parent=0
    _
  %s11 = ssub.s32 1, %s9
  %s12 = scalar_select 0, %s11, %s9
  $region1: #{tpu_custom_call.1} parent=0
    #allocation2 [shape = 'u8[8192]{0}', space=vmem, size = 0x2000, scoped, tag = 'input window, operand 0']
    #allocation3 [shape = 's32[2]{0}', space=sflag, size = 0x8, scoped, tag = 'scoped memory for tpu_custom_call.1']
    #allocation4 [shape = 's32[2]{0}', space=sflag, size = 0x8, scoped, tag = 'scoped memory for tpu_custom_call.1']
    #allocation5 [shape = 'u8[512]{0}', space=vmem, size = 0x400, scoped, tag = 'input window, operand 1, single buffered']
    #allocation6 [shape = 's32[1]{0}', space=sflag, size = 0x4, scoped, tag = 'scoped memory for tpu_custom_call.1']
    #allocation7 [shape = 'u8[65536]{0}', space=vmem, size = 0x10000, scoped, tag = 'input window, operand 3, single buffered']
    #allocation8 [shape = 'u8[32768]{0}', space=vmem, size = 0x8000, scoped, tag = 'output window, operand 0']
    #allocation9 [shape = 'u8[32768]{0}', space=vmem, size = 0x8000, scoped, tag = 'output window, operand 1']
    #allocation10 [shape = 's32[2]{0}', space=sflag, size = 0x8, scoped, tag = 'scoped memory for tpu_custom_call.1']
    #allocation11 [shape = 'u8[32768]{0}', space=vmem, size = 0x8000, scoped, tag = 'output window, operand 2']
    %13 = vsyncpa [#allocation3], 0
    %s14 = scalar_lea.sflag [#allocation3], 1
    %15 = vsyncpa %s14, 0
    %16 = vsyncpa [#allocation6], 0
    %17 = vsyncpa [#allocation4], 0
    %s18 = scalar_lea.sflag [#allocation4], 1
    %19 = vsyncpa %s18, 0
    %20 = vsyncpa [#allocation10], 0
    %s21 = scalar_lea.sflag [#allocation10], 1
    %22 = vsyncpa %s21, 0
    loop: start=0, step=1, limit=6
    $region2: #{tpu_custom_call.1} parent=1 // loop_pre_header
      _
    $region3: #{tpu_custom_call.1} parent=1 // loop_header
      %s24 = sphi 0, %s28
      %p25 = scmp.ge.s32.totalorder %s24, 6
      %s31 = sphi 0, %s43
      %s32 = sphi 0, %s39
      %s33 = sphi 0, %s31
      %s34 = sphi 0, %s32
      %s35 = sphi 0, %s33
      %s36 = sphi 0, %s34
      %s48 = sphi 0, %s50
      %s51 = sphi 0, %s48
      %s52 = sphi 0, %s51
      %s68 = sphi 0, %s52
      %s72 = sphi 0, %s72
      %s74 = sphi 0, %s72
      %s75 = sphi 0, %s74
      %s89 = sphi 0, %s75
      %s93 = sphi 0, %s93
      %s95 = sphi 0, %s93
      %s96 = sphi 0, %s95
      %s110 = sphi 0, %s96
      %s114 = sphi 0, %s114
      %s116 = sphi 0, %s114
      %s117 = sphi 0, %s116
      %s131 = sphi 0, %s117
      %s135 = sphi 0, %s135
      %s137 = sphi 0, %s135
      %s138 = sphi 0, %s137
      %s152 = sphi 0, %s138
      %s160 = sphi 0, %s162
      %s163 = sphi 0, %s160
      %s164 = sphi 0, %s163
      %s180 = sphi 0, %s164
      %s188 = sphi 0, %s190
      %s191 = sphi 0, %s188
      %s192 = sphi 0, %s191
      %s208 = sphi 0, %s192
      %s216 = sphi 0, %s218
      %s219 = sphi 0, %s216
      %s220 = sphi 0, %s219
      %s236 = sphi 0, %s220
    $region4: #{tpu_custom_call.1} parent=1 // loop_header_branch
      %27 = sbr.rel (%p25) target = $region8
    $region5: #{tpu_custom_call.1} parent=1 // loop_body
      %s29 = ssub.s32 %s24, 1
      %s30 = ssub.s32 %s24, 2
      %s37 = sadd.s32 1, %s32
      %p38 = scmp.ge.s32.totalorder %s37, 2
      %s39 = scalar_select %p38, 0, %s37
      %s40 = sadd.s32 1, %s31
      %s41 = scalar_select %p38, %s40, %s31
      %p42 = scmp.ge.s32.totalorder %s41, 2
      %s43 = scalar_select %p42, 0, %s41
      %s44 = ssub.s32 %s31, %s43
      %s45 = ssub.s32 %s32, %s39
      %s46 = sor.u32 %s44, %s45
      %p47 = scmp.eq.s32.totalorder %s46, 0
      %s49 = sadd.s32 %s48, 1
      %s50 = scalar_select %p47, %s48, %s49
      %p53 = pneg %p47
      %p54 = scmp.eq.s32.totalorder %s24, 3
      %p55 = por %p53, %p54
      %p56 = scmp.ne.s32.totalorder %s48, %s51
      %p57 = scmp.eq.s32.totalorder %s24, 0
      %p58 = por %p56, %p57
      %p59 = scmp.ne.s32.totalorder %s48, %s51
      %p60 = scmp.eq.s32.totalorder %s29, 3
      %p61 = por %p59, %p60
      %p62 = scmp.ne.s32.totalorder %s51, %s52
      %p63 = scmp.eq.s32.totalorder %s29, 0
      %p64 = por %p62, %p63
      %p65 = scmp.ne.s32.totalorder %s51, %s52
      %p66 = scmp.eq.s32.totalorder %s30, 3
      %p67 = por %p65, %p66
      %p69 = scmp.ne.s32.totalorder %s52, %s68
      %p70 = scmp.eq.s32.totalorder %s30, 0
      %p71 = por %p69, %p70
      %s73 = sadd.s32 %s72, 1
      %p76 = scmp.eq.s32.totalorder %s24, 3
      %p77 = scmp.ne.s32.totalorder %s72, %s74
      %p78 = scmp.eq.s32.totalorder %s24, 0
      %p79 = por %p77, %p78
      %p80 = scmp.ne.s32.totalorder %s72, %s74
      %p81 = scmp.eq.s32.totalorder %s29, 3
      %p82 = por %p80, %p81
      %p83 = scmp.ne.s32.totalorder %s74, %s75
      %p84 = scmp.eq.s32.totalorder %s29, 0
      %p85 = por %p83, %p84
      %p86 = scmp.ne.s32.totalorder %s74, %s75
      %p87 = scmp.eq.s32.totalorder %s30, 3
      %p88 = por %p86, %p87
      %p90 = scmp.ne.s32.totalorder %s75, %s89
      %p91 = scmp.eq.s32.totalorder %s30, 0
      %p92 = por %p90, %p91
      %s94 = sadd.s32 %s93, 1
      %p97 = scmp.eq.s32.totalorder %s24, 3
      %p98 = scmp.ne.s32.totalorder %s93, %s95
      %p99 = scmp.eq.s32.totalorder %s24, 0
      %p100 = por %p98, %p99
      %p101 = scmp.ne.s32.totalorder %s93, %s95
      %p102 = scmp.eq.s32.totalorder %s29, 3
      %p103 = por %p101, %p102
      %p104 = scmp.ne.s32.totalorder %s95, %s96
      %p105 = scmp.eq.s32.totalorder %s29, 0
      %p106 = por %p104, %p105
      %p107 = scmp.ne.s32.totalorder %s95, %s96
      %p108 = scmp.eq.s32.totalorder %s30, 3
      %p109 = por %p107, %p108
      %p111 = scmp.ne.s32.totalorder %s96, %s110
      %p112 = scmp.eq.s32.totalorder %s30, 0
      %p113 = por %p111, %p112
      %s115 = sadd.s32 %s114, 1
      %p118 = scmp.eq.s32.totalorder %s24, 3
      %p119 = scmp.ne.s32.totalorder %s114, %s116
      %p120 = scmp.eq.s32.totalorder %s24, 0
      %p121 = por %p119, %p120
      %p122 = scmp.ne.s32.totalorder %s114, %s116
      %p123 = scmp.eq.s32.totalorder %s29, 3
      %p124 = por %p122, %p123
      %p125 = scmp.ne.s32.totalorder %s116, %s117
      %p126 = scmp.eq.s32.totalorder %s29, 0
      %p127 = por %p125, %p126
      %p128 = scmp.ne.s32.totalorder %s116, %s117
      %p129 = scmp.eq.s32.totalorder %s30, 3
      %p130 = por %p128, %p129
      %p132 = scmp.ne.s32.totalorder %s117, %s131
      %p133 = scmp.eq.s32.totalorder %s30, 0
      %p134 = por %p132, %p133
      %s136 = sadd.s32 %s135, 1
      %p139 = scmp.eq.s32.totalorder %s24, 3
      %p140 = scmp.ne.s32.totalorder %s135, %s137
      %p141 = scmp.eq.s32.totalorder %s24, 0
      %p142 = por %p140, %p141
      %p143 = scmp.ne.s32.totalorder %s135, %s137
      %p144 = scmp.eq.s32.totalorder %s29, 3
      %p145 = por %p143, %p144
      %p146 = scmp.ne.s32.totalorder %s137, %s138
      %p147 = scmp.eq.s32.totalorder %s29, 0
      %p148 = por %p146, %p147
      %p149 = scmp.ne.s32.totalorder %s137, %s138
      %p150 = scmp.eq.s32.totalorder %s30, 3
      %p151 = por %p149, %p150
      %p153 = scmp.ne.s32.totalorder %s138, %s152
      %p154 = scmp.eq.s32.totalorder %s30, 0
      %p155 = por %p153, %p154
      %s156 = ssub.s32 %s31, %s43
      %s157 = ssub.s32 %s32, %s39
      %s158 = sor.u32 %s156, %s157
      %p159 = scmp.eq.s32.totalorder %s158, 0
      %s161 = sadd.s32 %s160, 1
      %s162 = scalar_select %p159, %s160, %s161
      %p165 = pneg %p159
      %p166 = scmp.eq.s32.totalorder %s24, 3
      %p167 = por %p165, %p166
      %p168 = scmp.ne.s32.totalorder %s160, %s163
      %p169 = scmp.eq.s32.totalorder %s24, 0
      %p170 = por %p168, %p169
      %p171 = scmp.ne.s32.totalorder %s160, %s163
      %p172 = scmp.eq.s32.totalorder %s29, 3
      %p173 = por %p171, %p172
      %p174 = scmp.ne.s32.totalorder %s163, %s164
      %p175 = scmp.eq.s32.totalorder %s29, 0
      %p176 = por %p174, %p175
      %p177 = scmp.ne.s32.totalorder %s163, %s164
      %p178 = scmp.eq.s32.totalorder %s30, 3
      %p179 = por %p177, %p178
      %p181 = scmp.ne.s32.totalorder %s164, %s180
      %p182 = scmp.eq.s32.totalorder %s30, 0
      %p183 = por %p181, %p182
      %s184 = ssub.s32 %s31, %s43
      %s185 = ssub.s32 %s32, %s39
      %s186 = sor.u32 %s184, %s185
      %p187 = scmp.eq.s32.totalorder %s186, 0
      %s189 = sadd.s32 %s188, 1
      %s190 = scalar_select %p187, %s188, %s189
      %p193 = pneg %p187
      %p194 = scmp.eq.s32.totalorder %s24, 3
      %p195 = por %p193, %p194
      %p196 = scmp.ne.s32.totalorder %s188, %s191
      %p197 = scmp.eq.s32.totalorder %s24, 0
      %p198 = por %p196, %p197
      %p199 = scmp.ne.s32.totalorder %s188, %s191
      %p200 = scmp.eq.s32.totalorder %s29, 3
      %p201 = por %p199, %p200
      %p202 = scmp.ne.s32.totalorder %s191, %s192
      %p203 = scmp.eq.s32.totalorder %s29, 0
      %p204 = por %p202, %p203
      %p205 = scmp.ne.s32.totalorder %s191, %s192
      %p206 = scmp.eq.s32.totalorder %s30, 3
      %p207 = por %p205, %p206
      %p209 = scmp.ne.s32.totalorder %s192, %s208
      %p210 = scmp.eq.s32.totalorder %s30, 0
      %p211 = por %p209, %p210
      %s212 = ssub.s32 %s31, %s43
      %s213 = ssub.s32 %s32, %s39
      %s214 = sor.u32 %s212, %s213
      %p215 = scmp.eq.s32.totalorder %s214, 0
      %s217 = sadd.s32 %s216, 1
      %s218 = scalar_select %p215, %s216, %s217
      %p221 = pneg %p215
      %p222 = scmp.eq.s32.totalorder %s24, 3
      %p223 = por %p221, %p222
      %p224 = scmp.ne.s32.totalorder %s216, %s219
      %p225 = scmp.eq.s32.totalorder %s24, 0
      %p226 = por %p224, %p225
      %p227 = scmp.ne.s32.totalorder %s216, %s219
      %p228 = scmp.eq.s32.totalorder %s29, 3
      %p229 = por %p227, %p228
      %p230 = scmp.ne.s32.totalorder %s219, %s220
      %p231 = scmp.eq.s32.totalorder %s29, 0
      %p232 = por %p230, %p231
      %p233 = scmp.ne.s32.totalorder %s219, %s220
      %p234 = scmp.eq.s32.totalorder %s30, 3
      %p235 = por %p233, %p234
      %p237 = scmp.ne.s32.totalorder %s220, %s236
      %p238 = scmp.eq.s32.totalorder %s30, 0
      %p239 = por %p237, %p238
      %p240 = scmp.le.s32.totalorder 1, %s24
      %p241 = scmp.lt.s32.totalorder %s24, 5
      %p242 = pnand %p240, %p241
      %p243 = pneg %p242
      // Predicated region
      $region9: #{tpu_custom_call.1} parent=5 // pred_check
        _
      $region10: #{tpu_custom_call.1} parent=5 // pred_check_branch
        %245 = sbr.rel (%p242) target = $region12
      $region11: #{tpu_custom_call.1} parent=5 // pred_region
        %s246 = ssub.s32 %s24, 1
        // Predicated region
        $region13: #{tpu_custom_call.1} parent=11 // pred_check
          %p247 = pneg %p85
        $region14: #{tpu_custom_call.1} parent=11 // pred_check_branch
          %249 = sbr.rel (%p247) target = $region16
        $region15: #{tpu_custom_call.1} parent=11 // pred_region
          %251 = vsyncadd [#allocation6], 0
          %s253 = sshll.u32 %s1, 4
          %s254 = int_to_ptr.hbm [resolvable:$true] %s253
          %s255 = sshll.u32 [#allocation5], 4
          %s256 = int_to_ptr.vmem [resolvable:$true] %s255
          %258 = dma.hbm_to_vmem [thread:$0]  %s254, 16, %s256, [#allocation6]
        $region16: #{tpu_custom_call.1} parent=11 // pred_fallthru
          _
        // Predicated region
        $region17: #{tpu_custom_call.1} parent=11 // pred_check
          %p259 = pneg %p106
        $region18: #{tpu_custom_call.1} parent=11 // pred_check_branch
          %261 = sbr.rel (%p259) target = $region20
        $region19: #{tpu_custom_call.1} parent=11 // pred_region
          _
        $region20: #{tpu_custom_call.1} parent=11 // pred_fallthru
          _
        // Predicated region
        $region21: #{tpu_custom_call.1} parent=11 // pred_check
          %p262 = pneg %p127
        $region22: #{tpu_custom_call.1} parent=11 // pred_check_branch
          %264 = sbr.rel (%p262) target = $region24
        $region23: #{tpu_custom_call.1} parent=11 // pred_region
          %266 = vsyncadd [#allocation6], 0
          %s267 = sshll.u32 %s3, 4
          %s268 = int_to_ptr.hbm [resolvable:$true] %s267
          %s269 = sshll.u32 [#allocation7], 4
          %s270 = int_to_ptr.vmem [resolvable:$true] %s269
          %275 = dma.hbm_to_vmem [thread:$0]  %s268, 2048, %s270, [#allocation6], 256, 256, 16
        $region24: #{tpu_custom_call.1} parent=11 // pred_fallthru
          _
        // Predicated region
        $region25: #{tpu_custom_call.1} parent=11 // pred_check
          %p276 = pneg %p148
        $region26: #{tpu_custom_call.1} parent=11 // pred_check_branch
          %278 = sbr.rel (%p276) target = $region28
        $region27: #{tpu_custom_call.1} parent=11 // pred_region
          _
        $region28: #{tpu_custom_call.1} parent=11 // pred_fallthru
          _
      $region12: #{tpu_custom_call.1} parent=5 // pred_fallthru
        _
      %p279 = scmp.lt.s32.totalorder %s24, 4
      // Predicated region
      $region29: #{tpu_custom_call.1} parent=5 // pred_check
        %p280 = pneg %p279
      $region30: #{tpu_custom_call.1} parent=5 // pred_check_branch
        %282 = sbr.rel (%p280) target = $region32
      $region31: #{tpu_custom_call.1} parent=5 // pred_region
        // Predicated region
        $region33: #{tpu_custom_call.1} parent=31 // pred_check
          %p283 = pneg %p58
        $region34: #{tpu_custom_call.1} parent=31 // pred_check_branch
          %285 = sbr.rel (%p283) target = $region36
        $region35: #{tpu_custom_call.1} parent=31 // pred_region
          %s286 = sand.u32 %s48, 1
          %s287 = scalar_lea.sflag [#allocation3], %s286
          %s288 = sand.u32 %s48, 1
          %s289 = smul.addr %s288, 8
          %s290 = scalar_lea.vmem [#allocation2], %s289
          %292 = vsyncadd %s287, 0
          %s293 = smul.addr %s31, 2
          %s294 = sadd.s32 %s32, %s293
          %s295 = smul.addr %s294, 8
          %s296 = scalar_lea.hbm %s0, %s295
          %s298 = sshll.u32 %s296, 4
          %s299 = int_to_ptr.hbm [resolvable:$true] %s298
          %s300 = sshll.u32 %s290, 4
          %s301 = int_to_ptr.vmem [resolvable:$true] %s300
          %303 = dma.hbm_to_vmem [thread:$0]  %s299, 128, %s301, %s287
        $region36: #{tpu_custom_call.1} parent=31 // pred_fallthru
          _
      $region32: #{tpu_custom_call.1} parent=5 // pred_fallthru
        _
      %p304 = scmp.le.s32.totalorder 1, %s24
      %p305 = scmp.lt.s32.totalorder %s24, 5
      %p306 = pnand %p304, %p305
      %p307 = pneg %p306
      // Predicated region
      $region37: #{tpu_custom_call.1} parent=5 // pred_check
        _
      $region38: #{tpu_custom_call.1} parent=5 // pred_check_branch
        %309 = sbr.rel (%p306) target = $region40
      $region39: #{tpu_custom_call.1} parent=5 // pred_region
        %s310 = ssub.s32 %s24, 1
        %s311 = sand.u32 %s51, 1
        %s312 = scalar_lea.sflag [#allocation3], %s311
        %s313 = sand.u32 %s51, 1
        %s314 = smul.addr %s313, 8
        %s315 = scalar_lea.vmem [#allocation2], %s314
        // Predicated region
        $region41: #{tpu_custom_call.1} parent=39 // pred_check
          %p316 = pneg %p64
        $region42: #{tpu_custom_call.1} parent=39 // pred_check_branch
          %318 = sbr.rel (%p316) target = $region44
        $region43: #{tpu_custom_call.1} parent=39 // pred_region
          %320 = dma.done %s312, 128
        $region44: #{tpu_custom_call.1} parent=39 // pred_fallthru
          _
        // Predicated region
        $region45: #{tpu_custom_call.1} parent=39 // pred_check
          %p321 = pneg %p85
        $region46: #{tpu_custom_call.1} parent=39 // pred_check_branch
          %323 = sbr.rel (%p321) target = $region48
        $region47: #{tpu_custom_call.1} parent=39 // pred_region
          %325 = dma.done [#allocation6], 16
        $region48: #{tpu_custom_call.1} parent=39 // pred_fallthru
          _
        // Predicated region
        $region49: #{tpu_custom_call.1} parent=39 // pred_check
          %p326 = pneg %p127
        $region50: #{tpu_custom_call.1} parent=39 // pred_check_branch
          %328 = sbr.rel (%p326) target = $region52
        $region51: #{tpu_custom_call.1} parent=39 // pred_region
          %330 = dma.done [#allocation6], 2048
        $region52: #{tpu_custom_call.1} parent=39 // pred_fallthru
          _
        %s331 = sand.u32 %s51, 1
        %s332 = scalar_lea.sflag [#allocation3], %s331
        %s333 = sand.u32 %s51, 1
        %s334 = smul.addr %s333, 8
        %s335 = scalar_lea.vmem [#allocation2], %s334
        %p336 = pneg %p64
        %p337 = pneg %p61
        %p338 = pneg %p85
        %p339 = pneg %p82
        %p340 = pneg %p106
        %p341 = pneg %p103
        %p342 = pneg %p127
        %p343 = pneg %p124
        %p344 = pneg %p148
        %p345 = pneg %p145
        %p346 = pneg %p176
        %p347 = pneg %p173
        %s348 = sand.u32 %s163, 1
        %s349 = scalar_lea.sflag [#allocation4], %s348
        %s350 = sand.u32 %s163, 1
        %s351 = smul.addr %s350, 32
        %s352 = scalar_lea.vmem [#allocation8], %s351
        %p353 = pneg %p204
        %p354 = pneg %p201
        %s355 = sand.u32 %s29, 1
        %s356 = scalar_lea.sflag [#allocation10], %s355
        %s357 = sand.u32 %s191, 1
        %s358 = smul.addr %s357, 32
        %s359 = scalar_lea.vmem [#allocation9], %s358
        %p360 = pneg %p232
        %p361 = pneg %p229
        %s362 = sand.u32 %s29, 1
        %s363 = scalar_lea.sflag [#allocation10], %s362
        %s364 = sand.u32 %s219, 1
        %s365 = smul.addr %s364, 32
        %s366 = scalar_lea.vmem [#allocation11], %s365
        %v367 = vld [vmem:[%s315] sm:$0xff]
        %v368 = vld [vmem:[#allocation5] sm:$0x1]
        %v369 = vld [vmem:[%s2] sm:$0x1]
        %vm370 = vcmask 523264
        %v371 = vsel %vm370, %v367, 0.0
        %372 = vadd.xlane.f32.xlu0 %v371
        %v373 = vpop.xlane.xlu0 %372
        %v374 = vrcp.pop 64.0
        %v375 = vmul.f32 64.0, %v374
        %v376 = vsub.f32 1.0, %v375
        %v377 = vmul.f32 %v374, %v376
        %v378 = vadd.f32 %v374, %v377
        %vm379 = vweird.f32 %v374
        %v380 = vsel %vm379, %v374, %v378
        %v381 = vmul.f32 %v373, %v380
        %v382 = vsub.f32 %v367, %v381
        %v383 = vmul.f32 %v382, %v382
        %v384 = vsel %vm370, %v383, 0.0
        %385 = vadd.xlane.f32.xlu0 %v384
        %v386 = vpop.xlane.xlu0 %385
        %v387 = vmul.f32 %v386, %v380
        %v388 = vadd.f32 %v387, 1e-05
        %v389 = vrsqrt.pop %v388
        %v390 = vmul.f32 %v389, %v388
        %v391 = vmul.f32 %v390, %v389
        %v392 = vmul.f32 0.5, %v391
        %v393 = vsub.f32 1.5, %v392
        %v394 = vmul.f32 %v389, %v393
        %vm395 = vweird.f32 %v388
        %vm396 = vweird.f32 %v389
        %vm397 = vmor %vm395, %vm396
        %v398 = vsel %vm397, %v389, %v394
        %v399 = vmul.f32 %v382, %v398
        %v401 = vperm.slane %v368, 0
        %v403 = vmul.f32 %v399, %v401
        %v405 = vperm.slane %v369, 0
        %v407 = vadd.f32 %v403, %v405
        %v408 = vld [vmem:[#allocation7] sm:$0xff]
        %v409 = vld [vmem:[#allocation7 + $0x8] sm:$0xff]
        %v410 = vld [vmem:[#allocation7 + $0x10] sm:$0xff]
        %v411 = vld [vmem:[#allocation7 + $0x18] sm:$0xff]
        %v412 = vld [vmem:[#allocation7 + $0x20] sm:$0xff]
        %v413 = vld [vmem:[#allocation7 + $0x28] sm:$0xff]
        %v414 = vld [vmem:[#allocation7 + $0x30] sm:$0xff]
        %v415 = vld [vmem:[#allocation7 + $0x38] sm:$0xff]
        %v416 = vld [vmem:[#allocation7 + $0x40] sm:$0xff]
        %v417 = vld [vmem:[#allocation7 + $0x48] sm:$0xff]
        %v418 = vld [vmem:[#allocation7 + $0x50] sm:$0xff]
        %v419 = vld [vmem:[#allocation7 + $0x58] sm:$0xff]
        %v420 = vld [vmem:[#allocation7 + $0x60] sm:$0xff]
        %v421 = vld [vmem:[#allocation7 + $0x68] sm:$0xff]
        %v422 = vld [vmem:[#allocation7 + $0x70] sm:$0xff]
        %v423 = vld [vmem:[#allocation7 + $0x78] sm:$0xff]
        %v424 = vld [vmem:[%s4] sm:$0x3]
        %v426 = vperm.slane %v424, 0
        %v427 = vperm.slane %v424, 1
        %v431 = vsel %vm370, %v407, 0
        %433 = vmatpush.msra.mxu0 0.0
        %434 = vmatpush.msra.mxu0 0.0
        %435 = vmatpush.msra.mxu0 0.0
        %436 = vmatpush.msra.mxu0 0.0
        %437 = vmatpush.msra.mxu0 0.0
        %438 = vmatpush.msra.mxu0 0.0
        %439 = vmatpush.msra.mxu0 0.0
        %440 = vmatpush.msra.mxu0 0.0
        %441 = vmatpush.msra.mxu0 %v422
        %442 = vmatpush.msra.mxu0 %v420
        %443 = vmatpush.msra.mxu0 %v418
        %444 = vmatpush.msra.mxu0 %v416
        %445 = vmatpush.msra.mxu0 %v414
        %446 = vmatpush.msra.mxu0 %v412
        %447 = vmatpush.msra.mxu0 %v410
        %448 = vmatpush.msra.mxu0 %v408
        %449 = vmatmul.f32.gmra.mxu0 %v431
        %v450 = vpop.f32.mrf.mxu0
        %v451 = vadd.f32 %v426, %v450
        %452 = vdwg.mxu0
        %453 = vmatpush.msra.mxu0 0.0
        %454 = vmatpush.msra.mxu0 0.0
        %455 = vmatpush.msra.mxu0 0.0
        %456 = vmatpush.msra.mxu0 0.0
        %457 = vmatpush.msra.mxu0 0.0
        %458 = vmatpush.msra.mxu0 0.0
        %459 = vmatpush.msra.mxu0 0.0
        %460 = vmatpush.msra.mxu0 0.0
        %461 = vmatpush.msra.mxu0 %v423
        %462 = vmatpush.msra.mxu0 %v421
        %463 = vmatpush.msra.mxu0 %v419
        %464 = vmatpush.msra.mxu0 %v417
        %465 = vmatpush.msra.mxu0 %v415
        %466 = vmatpush.msra.mxu0 %v413
        %467 = vmatpush.msra.mxu0 %v411
        %468 = vmatpush.msra.mxu0 %v409
        %469 = vmatmul.f32.gmra.mxu0 %v431
        %v470 = vpop.f32.mrf.mxu0
        %v471 = vadd.f32 %v427, %v470
        %472 = vdwg.mxu0
        %vm473 = vcmask 130048
        %474 = vst.msk [vmem:[%s352] sm:$0xff] %vm473, %v451
        %476 = vrot.lane.b32.xlu0 %v451, 64
        %v477 = vpop.permute.xlu0 %476
        %479 = vst.msk [vmem:[%s359] sm:$0xff] %vm473, %v477
        %480 = vst.msk [vmem:[%s366] sm:$0xff] %vm473, %v471
        %481 = vrot.lane.b32.xlu0 %v451, 112
        %v482 = vpop.permute.xlu0 %481
        %s484 = scalar_lea.vmem %s352, 8 [#allocation8]
        %485 = vst.msk [vmem:[%s484] sm:$0xff] %vm473, %v482
        %486 = vrot.lane.b32.xlu0 %v451, 48
        %v487 = vpop.permute.xlu0 %486
        %s489 = scalar_lea.vmem %s359, 8 [#allocation9]
        %490 = vst.msk [vmem:[%s489] sm:$0xff] %vm473, %v487
        %492 = vrot.lane.b32.xlu0 %v471, 112
        %v493 = vpop.permute.xlu0 %492
        %s495 = scalar_lea.vmem %s366, 8 [#allocation11]
        %496 = vst.msk [vmem:[%s495] sm:$0xff] %vm473, %v493
        %497 = vrot.lane.b32.xlu0 %v451, 96
        %v498 = vpop.permute.xlu0 %497
        %s500 = scalar_lea.vmem %s352, 16 [#allocation8]
        %501 = vst.msk [vmem:[%s500] sm:$0xff] %vm473, %v498
        %502 = vrot.lane.b32.xlu0 %v451, 32
        %v503 = vpop.permute.xlu0 %502
        %s505 = scalar_lea.vmem %s359, 16 [#allocation9]
        %506 = vst.msk [vmem:[%s505] sm:$0xff] %vm473, %v503
        %507 = vrot.lane.b32.xlu0 %v471, 96
        %v508 = vpop.permute.xlu0 %507
        %s510 = scalar_lea.vmem %s366, 16 [#allocation11]
        %511 = vst.msk [vmem:[%s510] sm:$0xff] %vm473, %v508
        %512 = vrot.lane.b32.xlu0 %v451, 80
        %v513 = vpop.permute.xlu0 %512
        %s515 = scalar_lea.vmem %s352, 24 [#allocation8]
        %516 = vst.msk [vmem:[%s515] sm:$0xff] %vm473, %v513
        %517 = vrot.lane.b32.xlu0 %v451, 16
        %v518 = vpop.permute.xlu0 %517
        %s520 = scalar_lea.vmem %s359, 24 [#allocation9]
        %521 = vst.msk [vmem:[%s520] sm:$0xff] %vm473, %v518
        %522 = vrot.lane.b32.xlu0 %v471, 80
        %v523 = vpop.permute.xlu0 %522
        %s525 = scalar_lea.vmem %s366, 24 [#allocation11]
        %526 = vst.msk [vmem:[%s525] sm:$0xff] %vm473, %v523
        %s527 = sand.u32 %s163, 1
        %s528 = scalar_lea.sflag [#allocation4], %s527
        %s529 = sand.u32 %s163, 1
        %s530 = smul.addr %s529, 32
        %s531 = scalar_lea.vmem [#allocation8], %s530
        %s532 = sand.u32 %s29, 1
        %s533 = scalar_lea.sflag [#allocation10], %s532
        %s534 = sand.u32 %s191, 1
        %s535 = smul.addr %s534, 32
        %s536 = scalar_lea.vmem [#allocation9], %s535
        %s537 = sand.u32 %s29, 1
        %s538 = scalar_lea.sflag [#allocation10], %s537
        %s539 = sand.u32 %s219, 1
        %s540 = smul.addr %s539, 32
        %s541 = scalar_lea.vmem [#allocation11], %s540
        // Predicated region
        $region53: #{tpu_custom_call.1} parent=39 // pred_check
          %p542 = pneg %p173
        $region54: #{tpu_custom_call.1} parent=39 // pred_check_branch
          %544 = sbr.rel (%p542) target = $region56
        $region55: #{tpu_custom_call.1} parent=39 // pred_region
          %546 = vsyncadd %s528, 0
          %s547 = smul.addr %s33, 8
          %s548 = sadd.s32 %s34, %s547
          %s549 = smul.addr %s548, 8
          %s550 = scalar_lea.hbm %s5, %s549
          %s551 = sshll.u32 %s531, 4
          %s552 = int_to_ptr.vmem [resolvable:$true] %s551
          %s553 = sshll.u32 %s550, 4
          %s554 = int_to_ptr.hbm [resolvable:$true] %s553
          %559 = dma.vmem_to_hbm [thread:$0]  %s552, 512, %s554, %s528, 128, 256, 8
        $region56: #{tpu_custom_call.1} parent=39 // pred_fallthru
          _
        // Predicated region
        $region57: #{tpu_custom_call.1} parent=39 // pred_check
          %p560 = pneg %p201
        $region58: #{tpu_custom_call.1} parent=39 // pred_check_branch
          %562 = sbr.rel (%p560) target = $region60
        $region59: #{tpu_custom_call.1} parent=39 // pred_region
          %564 = vsyncadd %s533, 0
          %s565 = smul.addr %s33, 8
          %s566 = sadd.s32 %s34, %s565
          %s567 = smul.addr %s566, 8
          %s568 = scalar_lea.hbm %s6, %s567
          %s569 = sshll.u32 %s536, 4
          %s570 = int_to_ptr.vmem [resolvable:$true] %s569
          %s571 = sshll.u32 %s568, 4
          %s572 = int_to_ptr.hbm [resolvable:$true] %s571
          %577 = dma.vmem_to_hbm [thread:$0]  %s570, 512, %s572, %s533, 128, 256, 8
        $region60: #{tpu_custom_call.1} parent=39 // pred_fallthru
          _
        // Predicated region
        $region61: #{tpu_custom_call.1} parent=39 // pred_check
          %p578 = pneg %p229
        $region62: #{tpu_custom_call.1} parent=39 // pred_check_branch
          %580 = sbr.rel (%p578) target = $region64
        $region63: #{tpu_custom_call.1} parent=39 // pred_region
          %582 = vsyncadd %s538, 0
          %s583 = smul.addr %s33, 8
          %s584 = sadd.s32 %s34, %s583
          %s585 = smul.addr %s584, 8
          %s586 = scalar_lea.hbm %s7, %s585
          %s587 = sshll.u32 %s541, 4
          %s588 = int_to_ptr.vmem [resolvable:$true] %s587
          %s589 = sshll.u32 %s586, 4
          %s590 = int_to_ptr.hbm [resolvable:$true] %s589
          %595 = dma.vmem_to_hbm [thread:$0]  %s588, 512, %s590, %s538, 128, 256, 8
        $region64: #{tpu_custom_call.1} parent=39 // pred_fallthru
          _
      $region40: #{tpu_custom_call.1} parent=5 // pred_fallthru
        _
      %p596 = scmp.le.s32.totalorder 2, %s24
      // Predicated region
      $region65: #{tpu_custom_call.1} parent=5 // pred_check
        %p597 = pneg %p596
      $region66: #{tpu_custom_call.1} parent=5 // pred_check_branch
        %599 = sbr.rel (%p597) target = $region68
      $region67: #{tpu_custom_call.1} parent=5 // pred_region
        %s600 = ssub.s32 %s24, 2
        // Predicated region
        $region69: #{tpu_custom_call.1} parent=67 // pred_check
          %p601 = pneg %p179
        $region70: #{tpu_custom_call.1} parent=67 // pred_check_branch
          %603 = sbr.rel (%p601) target = $region72
        $region71: #{tpu_custom_call.1} parent=67 // pred_region
          %s604 = sand.u32 %s164, 1
          %s605 = scalar_lea.sflag [#allocation4], %s604
          %s606 = sand.u32 %s164, 1
          %s607 = smul.addr %s606, 32
          %s608 = scalar_lea.vmem [#allocation8], %s607
          %610 = dma.done %s605, 512
        $region72: #{tpu_custom_call.1} parent=67 // pred_fallthru
          _
        // Predicated region
        $region73: #{tpu_custom_call.1} parent=67 // pred_check
          %p611 = pneg %p207
        $region74: #{tpu_custom_call.1} parent=67 // pred_check_branch
          %613 = sbr.rel (%p611) target = $region76
        $region75: #{tpu_custom_call.1} parent=67 // pred_region
          %s614 = sand.u32 %s30, 1
          %s615 = scalar_lea.sflag [#allocation10], %s614
          %s616 = sand.u32 %s192, 1
          %s617 = smul.addr %s616, 32
          %s618 = scalar_lea.vmem [#allocation9], %s617
          %620 = dma.done %s615, 512
        $region76: #{tpu_custom_call.1} parent=67 // pred_fallthru
          _
        // Predicated region
        $region77: #{tpu_custom_call.1} parent=67 // pred_check
          %p621 = pneg %p235
        $region78: #{tpu_custom_call.1} parent=67 // pred_check_branch
          %623 = sbr.rel (%p621) target = $region80
        $region79: #{tpu_custom_call.1} parent=67 // pred_region
          %s624 = sand.u32 %s30, 1
          %s625 = scalar_lea.sflag [#allocation10], %s624
          %s626 = sand.u32 %s220, 1
          %s627 = smul.addr %s626, 32
          %s628 = scalar_lea.vmem [#allocation11], %s627
          %630 = dma.done %s625, 512
        $region80: #{tpu_custom_call.1} parent=67 // pred_fallthru
          _
      $region68: #{tpu_custom_call.1} parent=5 // pred_fallthru
        _
    $region6: #{tpu_custom_call.1} parent=1 // loop_footer
      %s28 = sadd.s32 1, %s24
    $region7: #{tpu_custom_call.1} parent=1 // loop_footer_branch
      %23 = sbr.rel target = $region3
    $region8: #{tpu_custom_call.1} parent=1 // loop_exit
      _
    %631 = vsyncpa [#allocation3], 1
    %s632 = scalar_lea.sflag [#allocation3], 1
    %633 = vsyncpa %s632, 1
    %634 = vsyncpa [#allocation6], 1
    %635 = vsyncpa [#allocation4], 1
    %s636 = scalar_lea.sflag [#allocation4], 1
    %637 = vsyncpa %s636, 1
    %638 = vsyncpa [#allocation10], 1
    %s639 = scalar_lea.sflag [#allocation10], 1
    %640 = vsyncpa %s639, 1

</llo_original>
